<compile_context>
chip_gen: v5e
topology: v5e:2x2
jax: 0.10.0
libtpu: 0.0.40
codegen_flags: <defaults>
</compile_context>

<pallas_src>
import functools
import math

import jax
import jax.numpy as jnp
from jax import lax
from jax.experimental import pallas as pl
from jax.experimental.pallas import tpu as pltpu


def _round_up(a, b):
    return ((a + b - 1) // b) * b


def _to_i32(v):
    """Wrap an unsigned 32-bit python int into the int32 two's-complement range."""
    return ((int(v) + (1 << 31)) % (1 << 32)) - (1 << 31)


# Hash / stream constants (wrapped to int32 so jnp accepts them with x64 off).
_GOLDEN = _to_i32(0x9E3779B9)
_M1 = _to_i32(0x7FEB352D)
_M2 = _to_i32(0x846CA68B)
_C1 = _to_i32(0x27D4EB2F)
_C2 = _to_i32(0x85EBCA6B)


# ------------------------------- kernel -------------------------------------

def _gaussian_noise_kernel(seed_ref, x_ref, o_ref, *, mean, std, lanes):
    shape = x_ref.shape
    tile_m = shape[0]
    row0 = pl.program_id(0) * tile_m

    # Global element id (unique per element across the whole array; int32 wrap
    # is fine — it only feeds the hash).
    rows = lax.broadcasted_iota(jnp.int32, shape, 0) + row0
    cols = lax.broadcasted_iota(jnp.int32, shape, 1)
    idx = rows * jnp.int32(lanes) + cols
    base = idx * jnp.int32(_GOLDEN) + seed_ref[0]

    def _mix(v):
        # splitmix/murmur-style 32-bit avalanche (wrapping int32 arithmetic).
        v = v ^ lax.shift_right_logical(v, jnp.int32(16))
        v = v * jnp.int32(_M1)
        v = v ^ lax.shift_right_logical(v, jnp.int32(15))
        v = v * jnp.int32(_M2)
        v = v ^ lax.shift_right_logical(v, jnp.int32(16))
        return v

    b1 = _mix(base ^ jnp.int32(_C1))
    b2 = _mix(base ^ jnp.int32(_C2))

    # Top 24 bits -> uniforms. u1 in (0, 1] (log-safe), u2 in [0, 1).
    scale = jnp.float32(1.0 / (1 << 24))
    u1 = (lax.shift_right_logical(b1, jnp.int32(8)).astype(jnp.float32) + 1.0) * scale
    u2 = lax.shift_right_logical(b2, jnp.int32(8)).astype(jnp.float32) * scale

    # Box-Muller: standard normal noise, generated on the fly (no HBM traffic).
    noise = jnp.sqrt(-2.0 * jnp.log(u1)) * jnp.cos(jnp.float32(2.0 * math.pi) * u2)

    xv = x_ref[...].astype(jnp.float32)
    o_ref[...] = (xv + noise * jnp.float32(std) + jnp.float32(mean)).astype(o_ref.dtype)


# ------------------------------- wrapper -------------------------------------

def gaussian_noise(x, seed=0, *, mean=0.0, std=0.01, training=True,
                   max_tile_rows=1024, lanes=128):
    """Training: x + N(mean, std^2) elementwise noise.  Eval: identity."""
    if not training:
        return x  # matches the PyTorch module: no work in eval mode

    orig_shape = x.shape
    n = int(x.size)
    flat = x.reshape(-1)

    rows = max(1, -(-n // lanes))                     # ceil(n / lanes)
    tile_m = min(max_tile_rows, _round_up(rows, 8))   # sublane-aligned tile height
    rows_p = _round_up(rows, tile_m)                  # grid divides evenly
    pad = rows_p * lanes - n
    if pad:
        flat = jnp.pad(flat, (0, pad))
    x2d = flat.reshape(rows_p, lanes)                 # lane-dense (128) slab

    seed_arr = jnp.atleast_1d(jnp.asarray(seed, dtype=jnp.int32))
    kernel = functools.partial(_gaussian_noise_kernel,
                               mean=float(mean), std=float(std), lanes=lanes)

    out2d = pl.pallas_call(
        kernel,
        out_shape=jax.ShapeDtypeStruct((rows_p, lanes), x.dtype),
        grid_spec=pltpu.PrefetchScalarGridSpec(
            num_scalar_prefetch=1,                    # seed lives in SMEM
            grid=(rows_p // tile_m,),
            in_specs=[pl.BlockSpec((tile_m, lanes), lambda i, seed: (i, 0))],
            out_specs=pl.BlockSpec((tile_m, lanes), lambda i, seed: (i, 0)),
        ),
        compiler_params=pltpu.CompilerParams(
            dimension_semantics=("parallel",),        # pipeline + megacore shard
        ),
    )(seed_arr, x2d)

    return out2d.reshape(-1)[:n].reshape(orig_shape)


# --------------------------------- main --------------------------------------

if __name__ == "__main__":
    key = jax.random.PRNGKey(0)
    B, C, H, W = 2, 4, 16, 16
    x = jax.random.normal(key, (B, C, H, W), jnp.float32)
    mean, std = 0.0, 0.01

    fwd = jax.jit(functools.partial(gaussian_noise, mean=mean, std=std, training=True))
    out = jax.block_until_ready(fwd(x, 0))

    assert out.shape == x.shape, out.shape
    assert out.dtype == x.dtype, out.dtype
    assert bool(jnp.all(jnp.isfinite(out)))

    diff = out - x
    # Loose statistical sanity checks on the injected noise (2048 samples).
    assert float(jnp.max(jnp.abs(diff - mean))) < 10.0 * std
    assert 0.2 * std < float(jnp.std(diff)) < 5.0 * std

    # Different seeds give different noise; same seed is deterministic.
    out2 = jax.block_until_ready(fwd(x, 1))
    assert not bool(jnp.array_equal(out, out2))
    assert bool(jnp.array_equal(out, jax.block_until_ready(fwd(x, 0))))

    # Eval mode is an exact identity, exactly like the PyTorch module.
    assert bool(jnp.array_equal(gaussian_noise(x, 0, training=False), x))

    print("KERNEL_OK")
</pallas_src>

<mosaic_0001>
module attributes {stable_mosaic.version = 11 : i64} {
  func.func @_gaussian_noise_kernel(%arg0: i32, %arg1: memref<1xi32, #tpu.memory_space<smem>>, %arg2: memref<16x128xf32, #tpu.memory_space<vmem>>, %arg3: memref<16x128xf32, #tpu.memory_space<vmem>>) attributes {dimension_semantics = [#tpu.dimension_semantics<parallel>], iteration_bounds = array<i64: 1>, scalar_prefetch = 1 : i64, scratch_operands = 0 : i64, tpu.core_type = #tpu.core_type<tc>, window_params = [{transform_indices = @transform_0, window_bounds = array<i64: 16, 128>}, {transform_indices = @transform_1, window_bounds = array<i64: 16, 128>}]} {
    %c16_i32 = arith.constant 16 : i32
    %0 = arith.muli %arg0, %c16_i32 : i32
    %1 = tpu.iota {dimensions = array<i32: 0>} : vector<16x128xi32>
    %2 = vector.broadcast %0 : i32 to vector<16x128xi32>
    %3 = arith.addi %1, %2 : vector<16x128xi32>
    %4 = tpu.iota {dimensions = array<i32: 1>} : vector<16x128xi32>
    %c128_i32 = arith.constant 128 : i32
    %5 = vector.broadcast %c128_i32 : i32 to vector<16x128xi32>
    %6 = arith.muli %3, %5 : vector<16x128xi32>
    %7 = arith.addi %6, %4 : vector<16x128xi32>
    %c-1640531527_i32 = arith.constant -1640531527 : i32
    %8 = vector.broadcast %c-1640531527_i32 : i32 to vector<16x128xi32>
    %9 = arith.muli %7, %8 : vector<16x128xi32>
    %c0 = arith.constant 0 : index
    %10 = memref.load %arg1[%c0] : memref<1xi32, #tpu.memory_space<smem>>
    %11 = vector.broadcast %10 : i32 to vector<16x128xi32>
    %12 = arith.addi %9, %11 : vector<16x128xi32>
    %c668265263_i32 = arith.constant 668265263 : i32
    %13 = vector.broadcast %c668265263_i32 : i32 to vector<16x128xi32>
    %14 = arith.xori %12, %13 : vector<16x128xi32>
    %c16_i32_0 = arith.constant 16 : i32
    %15 = vector.broadcast %c16_i32_0 : i32 to vector<16x128xi32>
    %16 = arith.shrui %14, %15 : vector<16x128xi32>
    %17 = arith.xori %14, %16 : vector<16x128xi32>
    %c2146121005_i32 = arith.constant 2146121005 : i32
    %18 = vector.broadcast %c2146121005_i32 : i32 to vector<16x128xi32>
    %19 = arith.muli %17, %18 : vector<16x128xi32>
    %c15_i32 = arith.constant 15 : i32
    %20 = vector.broadcast %c15_i32 : i32 to vector<16x128xi32>
    %21 = arith.shrui %19, %20 : vector<16x128xi32>
    %22 = arith.xori %19, %21 : vector<16x128xi32>
    %c-2073254261_i32 = arith.constant -2073254261 : i32
    %23 = vector.broadcast %c-2073254261_i32 : i32 to vector<16x128xi32>
    %24 = arith.muli %22, %23 : vector<16x128xi32>
    %c16_i32_1 = arith.constant 16 : i32
    %25 = vector.broadcast %c16_i32_1 : i32 to vector<16x128xi32>
    %26 = arith.shrui %24, %25 : vector<16x128xi32>
    %27 = arith.xori %24, %26 : vector<16x128xi32>
    %c-2048144789_i32 = arith.constant -2048144789 : i32
    %28 = vector.broadcast %c-2048144789_i32 : i32 to vector<16x128xi32>
    %29 = arith.xori %12, %28 : vector<16x128xi32>
    %c16_i32_2 = arith.constant 16 : i32
    %30 = vector.broadcast %c16_i32_2 : i32 to vector<16x128xi32>
    %31 = arith.shrui %29, %30 : vector<16x128xi32>
    %32 = arith.xori %29, %31 : vector<16x128xi32>
    %c2146121005_i32_3 = arith.constant 2146121005 : i32
    %33 = vector.broadcast %c2146121005_i32_3 : i32 to vector<16x128xi32>
    %34 = arith.muli %32, %33 : vector<16x128xi32>
    %c15_i32_4 = arith.constant 15 : i32
    %35 = vector.broadcast %c15_i32_4 : i32 to vector<16x128xi32>
    %36 = arith.shrui %34, %35 : vector<16x128xi32>
    %37 = arith.xori %34, %36 : vector<16x128xi32>
    %c-2073254261_i32_5 = arith.constant -2073254261 : i32
    %38 = vector.broadcast %c-2073254261_i32_5 : i32 to vector<16x128xi32>
    %39 = arith.muli %37, %38 : vector<16x128xi32>
    %c16_i32_6 = arith.constant 16 : i32
    %40 = vector.broadcast %c16_i32_6 : i32 to vector<16x128xi32>
    %41 = arith.shrui %39, %40 : vector<16x128xi32>
    %42 = arith.xori %39, %41 : vector<16x128xi32>
    %c8_i32 = arith.constant 8 : i32
    %43 = vector.broadcast %c8_i32 : i32 to vector<16x128xi32>
    %44 = arith.shrui %27, %43 : vector<16x128xi32>
    %45 = arith.sitofp %44 : vector<16x128xi32> to vector<16x128xf32>
    %cst = arith.constant 1.000000e+00 : f32
    %46 = vector.broadcast %cst : f32 to vector<16x128xf32>
    %47 = arith.addf %45, %46 : vector<16x128xf32>
    %cst_7 = arith.constant 5.96046448E-8 : f32
    %48 = vector.broadcast %cst_7 : f32 to vector<16x128xf32>
    %49 = arith.mulf %47, %48 : vector<16x128xf32>
    %c8_i32_8 = arith.constant 8 : i32
    %50 = vector.broadcast %c8_i32_8 : i32 to vector<16x128xi32>
    %51 = arith.shrui %42, %50 : vector<16x128xi32>
    %52 = arith.sitofp %51 : vector<16x128xi32> to vector<16x128xf32>
    %cst_9 = arith.constant 5.96046448E-8 : f32
    %53 = vector.broadcast %cst_9 : f32 to vector<16x128xf32>
    %54 = arith.mulf %52, %53 : vector<16x128xf32>
    %55 = math.log %49 : vector<16x128xf32>
    %cst_10 = arith.constant -2.000000e+00 : f32
    %56 = vector.broadcast %cst_10 : f32 to vector<16x128xf32>
    %57 = arith.mulf %56, %55 : vector<16x128xf32>
    %58 = math.sqrt %57 : vector<16x128xf32>
    %cst_11 = arith.constant 6.28318548 : f32
    %59 = vector.broadcast %cst_11 : f32 to vector<16x128xf32>
    %60 = arith.mulf %59, %54 : vector<16x128xf32>
    %61 = math.cos %60 : vector<16x128xf32>
    %62 = arith.mulf %58, %61 : vector<16x128xf32>
    %c0_12 = arith.constant 0 : index
    %c0_13 = arith.constant 0 : index
    %63 = vector.load %arg2[%c0_12, %c0_13] : memref<16x128xf32, #tpu.memory_space<vmem>>, vector<16x128xf32>
    %cst_14 = arith.constant 0.00999999977 : f32
    %64 = vector.broadcast %cst_14 : f32 to vector<16x128xf32>
    %65 = arith.mulf %62, %64 : vector<16x128xf32>
    %66 = arith.addf %63, %65 : vector<16x128xf32>
    %cst_15 = arith.constant 0.000000e+00 : f32
    %67 = vector.broadcast %cst_15 : f32 to vector<16x128xf32>
    %68 = arith.addf %66, %67 : vector<16x128xf32>
    %c0_16 = arith.constant 0 : index
    %c0_17 = arith.constant 0 : index
    %69 = vector.load %arg3[%c0_16, %c0_17] : memref<16x128xf32, #tpu.memory_space<vmem>>, vector<16x128xf32>
    tpu.vector_store %arg3[%c0_16, %c0_17], %68 {strides = array<i32>} : memref<16x128xf32, #tpu.memory_space<vmem>>, vector<16x128xf32>,
    return
  }
  func.func @transform_0(%arg0: i32, %arg1: memref<1xi32, #tpu.memory_space<smem>>) -> (i32, i32) {
    %c0_i32 = arith.constant 0 : i32
    %c0_i32_0 = arith.constant 0 : i32
    return %arg0, %c0_i32 : i32, i32
  }
  func.func @transform_1(%arg0: i32, %arg1: memref<1xi32, #tpu.memory_space<smem>>) -> (i32, i32) {
    %c0_i32 = arith.constant 0 : i32
    %c0_i32_0 = arith.constant 0 : i32
    return %arg0, %c0_i32 : i32, i32
  }
}

</mosaic_0001>

<llo_original>
// kernel: gaussian_noise.1
$region0: #{gaussian_noise.1}
  #allocation0 [shape = 'u32[]', space=smem, size = 0x4, offset = 0x4, fixed_abs, tag = 'smem constant byte address 0x4 - core index']
  #allocation1 [shape = 'u32[72,128]{1,0:T(1,128)}', space=vmem, size = 0x9000, scoped, tag = 'internal scratch']
  #allocation2 [shape = 's32[1]{0}', space=sflag, size = 0x4, scoped, tag = 'scoped memory for gaussian_noise.1']
  #allocation3 [shape = 's32[1]{0:T(128)S(6)}', space=smem, size = 0x200, scoped, tag = 'prefetched SMEM operand 0']
  %s0 = inlined_call_operand.<no memory space> [shape: s32[1], index: 0, kind: input, shape index: {}]
  %s1 = inlined_call_operand.vmem [shape: f32[16,128], index: 1, kind: input, shape index: {}]
  %s2 = inlined_call_operand.vmem [shape: f32[16,128], index: 2, kind: output, shape index: {}]
  %s3 = sld [smem:[#allocation0]]
  $region14: #{gaussian_noise.1} parent=0
    _
  %s5 = ssub.s32 1, %s3
  %s6 = scalar_select 0, %s5, %s3
  %7 = sst [smem:[#allocation3]] %s0
  // Predicated region
  $region2: #{gaussian_noise.1} parent=0 // pred_check
    _
  $region3: #{gaussian_noise.1} parent=0 // pred_check_branch
    %9 = sbr.rel (0) target = $region5
  $region4: #{gaussian_noise.1} parent=0 // pred_region
    _
  $region5: #{gaussian_noise.1} parent=0 // pred_fallthru
    _
  %s10 = smul.u32 0, 16
  %v11 = vlaneseq
  %v12 = vshrl.u32 %v11, 7
  %v13 = vadd.s32 %v12, 8
  %v14 = vstv %s10
  %v15 = vadd.s32 %v12, %v14
  %v16 = vadd.s32 %v13, %v14
  %v17 = vlaneseq
  %v18 = vand.u32 %v17, 127
  %v19 = vmul.u32 %v15, 128
  %v20 = vmul.u32 %v16, 128
  %v21 = vadd.s32 %v19, %v18
  %v22 = vadd.s32 %v20, %v18
  %v23 = vmul.u32 %v21, 2654435769
  %v24 = vmul.u32 %v22, 2654435769
  %s25 = sld [smem:[#allocation3]]
  %v26 = vstv %s25
  %v27 = vadd.s32 %v23, %v26
  %v28 = vadd.s32 %v24, %v26
  %v29 = vxor.u32 %v27, 668265263
  %v30 = vxor.u32 %v28, 668265263
  %v31 = vshrl.u32 %v29, 16
  %v32 = vshrl.u32 %v30, 16
  %v33 = vxor.u32 %v29, %v31
  %v34 = vxor.u32 %v30, %v32
  %v35 = vmul.u32 %v33, 2146121005
  %v36 = vmul.u32 %v34, 2146121005
  %v37 = vshrl.u32 %v35, 15
  %v38 = vshrl.u32 %v36, 15
  %v39 = vxor.u32 %v35, %v37
  %v40 = vxor.u32 %v36, %v38
  %v41 = vmul.u32 %v39, 2221713035
  %v42 = vmul.u32 %v40, 2221713035
  %v43 = vshrl.u32 %v41, 16
  %v44 = vshrl.u32 %v42, 16
  %v45 = vxor.u32 %v41, %v43
  %v46 = vxor.u32 %v42, %v44
  %v47 = vxor.u32 %v27, 2246822507
  %v48 = vxor.u32 %v28, 2246822507
  %v49 = vshrl.u32 %v47, 16
  %v50 = vshrl.u32 %v48, 16
  %v51 = vxor.u32 %v47, %v49
  %v52 = vxor.u32 %v48, %v50
  %v53 = vmul.u32 %v51, 2146121005
  %v54 = vmul.u32 %v52, 2146121005
  %v55 = vshrl.u32 %v53, 15
  %v56 = vshrl.u32 %v54, 15
  %v57 = vxor.u32 %v53, %v55
  %v58 = vxor.u32 %v54, %v56
  %v59 = vmul.u32 %v57, 2221713035
  %v60 = vmul.u32 %v58, 2221713035
  %v61 = vshrl.u32 %v59, 16
  %v62 = vshrl.u32 %v60, 16
  %v63 = vxor.u32 %v59, %v61
  %v64 = vxor.u32 %v60, %v62
  %v65 = vshrl.u32 %v45, 8
  %v66 = vshrl.u32 %v46, 8
  %v67 = vcvt.s32.f32 %v65
  %v68 = vcvt.s32.f32 %v66
  %v69 = vadd.f32 %v67, 1.0
  %v70 = vadd.f32 %v68, 1.0
  %v71 = vmul.f32 %v69, 5.9604645e-08
  %v72 = vmul.f32 %v70, 5.9604645e-08
  %v73 = vshrl.u32 %v63, 8
  %v74 = vshrl.u32 %v64, 8
  %v75 = vcvt.s32.f32 %v73
  %v76 = vcvt.s32.f32 %v74
  %v77 = vmul.f32 %v75, 5.9604645e-08
  %v78 = vmul.f32 %v76, 5.9604645e-08
  %v79 = vlog2.pop %v71
  %v80 = vmul.f32 %v79, 0.6931472
  %v81 = vlog2.pop %v72
  %v82 = vmul.f32 %v81, 0.6931472
  %v83 = vmul.f32 %v80, -2.0
  %v84 = vmul.f32 %v82, -2.0
  %v85 = vrsqrt.pop %v83
  %v86 = vmul.f32 %v85, %v83
  %v87 = vmul.f32 %v86, %v85
  %v88 = vmul.f32 0.5, %v87
  %v89 = vsub.f32 1.5, %v88
  %v90 = vmul.f32 %v85, %v89
  %v91 = vmul.f32 %v83, %v90
  %vm92 = vcmp.eq.f32.partialorder %v83, inf
  %v93 = vsel %vm92, %v83, %v91
  %vm94 = vcmp.eq.f32.partialorder %v83, 0.0
  %v95 = vand.u32 %v83, 2147483648
  %v96 = vsel %vm94, %v95, %v93
  %v97 = vrsqrt.pop %v84
  %v98 = vmul.f32 %v97, %v84
  %v99 = vmul.f32 %v98, %v97
  %v100 = vmul.f32 0.5, %v99
  %v101 = vsub.f32 1.5, %v100
  %v102 = vmul.f32 %v97, %v101
  %v103 = vmul.f32 %v84, %v102
  %vm104 = vcmp.eq.f32.partialorder %v84, inf
  %v105 = vsel %vm104, %v84, %v103
  %vm106 = vcmp.eq.f32.partialorder %v84, 0.0
  %v107 = vand.u32 %v84, 2147483648
  %v108 = vsel %vm106, %v107, %v105
  %v109 = vmul.f32 %v77, 6.2831855
  %v110 = vmul.f32 %v78, 6.2831855
  %v111 = vand.u32 2147483647, %v109
  %vm112 = vcmp.le.f32.partialorder %v111, 0.7853982
  %vm113 = vcmp.lt.s32.totalorder %v109, 0
  %v114 = vand.u32 %v109, 2139095040
  %v115 = vshrl.u32 %v114, 23
  %v116 = vsub.s32 %v115, 127
  %v117 = vand.u32 2147483647, %v109
  %v118 = vand.u32 %v117, 8388607
  %v119 = vor.u32 %v118, 8388608
  %v120 = vsub.s32 0, %v119
  %v121 = vadd.s32 %v116, 1
  %vm122 = vcmp.gt.s32.totalorder %v121, 0
  %v123 = vsel %vm122, %v121, 0
  %v124 = vshrl.u32 %v123, 5
  %v125 = vand.u32 %v123, 31
  %v126 = vsub.s32 32, %v125
  %v127 = vshrl.u32 683565275, %v126
  %v128 = vshll.u32 683565275, %v125
  %v129 = vshrl.u32 2475754826, %v126
  %v130 = vor.u32 %v128, %v129
  %v131 = vshll.u32 2475754826, %v125
  %v132 = vshrl.u32 2131351028, %v126
  %v133 = vor.u32 %v131, %v132
  %v134 = vshll.u32 2131351028, %v125
  %v135 = vshrl.u32 2102212464, %v126
  %v136 = vor.u32 %v134, %v135
  %v137 = vshll.u32 2102212464, %v125
  %v138 = vshrl.u32 920167782, %v126
  %v139 = vor.u32 %v137, %v138
  %v140 = vshll.u32 920167782, %v125
  %v141 = vshrl.u32 1326507024, %v126
  %v142 = vor.u32 %v140, %v141
  %vm143 = vcmp.lt.s32.totalorder %v124, 1
  %vm144 = vcmp.lt.s32.totalorder %v124, 2
  %vm145 = vcmp.lt.s32.totalorder %v124, 3
  %vm146 = vcmp.lt.s32.totalorder %v124, 4
  %v147 = vsel %vm143, %v127, %v130
  %v148 = vsel %vm146, %v136, 2102212464
  %v149 = vsel %vm145, %v133, %v148
  %v150 = vsel %vm144, %v147, %v149
  %v151 = vsel %vm143, %v130, %v133
  %v152 = vsel %vm146, %v139, 920167782
  %v153 = vsel %vm145, %v136, %v152
  %v154 = vsel %vm144, %v151, %v153
  %v155 = vsel %vm143, %v133, %v136
  %v156 = vsel %vm146, %v142, 1326507024
  %v157 = vsel %vm145, %v139, %v156
  %v158 = vsel %vm144, %v155, %v157
  %v159 = vshll.u32 %v119, 8
  %v160 = vand.u32 %v159, 65535
  %v161 = vshrl.u32 %v159, 16
  %v162 = vand.u32 %v158, 65535
  %v163 = vshrl.u32 %v158, 16
  %v164 = vmul.u32 %v160, %v162
  %v165 = vmul.u32 %v160, %v163
  %v166 = vmul.u32 %v161, %v162
  %v167 = vmul.u32 %v161, %v163
  %v168 = vshll.u32 %v165, 16
  %v169 = vshrl.u32 %v165, 16
  %v170 = vshll.u32 %v166, 16
  %v171 = vshrl.u32 %v166, 16
  %vm172 = vc.u32 %v164, %v168
  %v173 = vsel %vm172, 1, 0
  %v174 = vadd.s32 %v164, %v168
  %v175 = vadd.s32 %v167, %v173
  %vm176 = vc.u32 %v174, %v170
  %v177 = vsel %vm176, 1, 0
  %v178 = vadd.s32 %v174, %v170
  %v179 = vadd.s32 %v175, %v177
  %v180 = vadd.s32 %v179, %v169
  %v181 = vadd.s32 %v180, %v171
  %v182 = vand.u32 %v159, 65535
  %v183 = vshrl.u32 %v159, 16
  %v184 = vand.u32 %v154, 65535
  %v185 = vshrl.u32 %v154, 16
  %v186 = vmul.u32 %v182, %v184
  %v187 = vmul.u32 %v182, %v185
  %v188 = vmul.u32 %v183, %v184
  %v189 = vmul.u32 %v183, %v185
  %v190 = vshll.u32 %v187, 16
  %v191 = vshrl.u32 %v187, 16
  %v192 = vshll.u32 %v188, 16
  %v193 = vshrl.u32 %v188, 16
  %vm194 = vc.u32 %v186, %v190
  %v195 = vsel %vm194, 1, 0
  %v196 = vadd.s32 %v186, %v190
  %v197 = vadd.s32 %v189, %v195
  %vm198 = vc.u32 %v196, %v192
  %v199 = vsel %vm198, 1, 0
  %v200 = vadd.s32 %v196, %v192
  %v201 = vadd.s32 %v197, %v199
  %v202 = vadd.s32 %v201, %v191
  %v203 = vadd.s32 %v202, %v193
  %v204 = vmul.u32 %v159, %v150
  %v205 = vadd.s32 %v181, %v200
  %vm206 = vc.u32 %v181, %v200
  %v207 = vadd.s32 %v203, 1
  %v208 = vsel %vm206, %v207, %v203
  %v209 = vadd.s32 %v204, %v208
  %v210 = vadd.s32 %v209, 536870912
  %v211 = vshrl.u32 %v210, 30
  %v212 = vshll.u32 %v211, 30
  %v213 = vsub.s32 %v209, %v212
  %vm214 = vcmp.lt.s32.totalorder %v213, 0
  %v215 = vsub.s32 0, %v213
  %v216 = vsel %vm214, %v215, %v213
  %v217 = vclz %v216
  %v218 = vsub.s32 %v217, 2
  %vm219 = vcmp.gt.s32.totalorder 0, %v218
  %v220 = vsel %vm219, 0, %v218
  %v221 = vsub.s32 32, %v220
  %v222 = vshll.u32 %v213, %v220
  %v223 = vshrl.u32 %v205, %v221
  %v224 = vor.u32 %v222, %v223
  %v225 = vsub.s32 4294967266, %v220
  %v226 = vadd.s32 %v225, 127
  %v227 = vshll.u32 %v226, 23
  %v228 = vor.u32 4788187, %v227
  %v229 = vand.u32 2147483647, %v228
  %v231 = vcvt.s32.f32 %v224
  %v232 = vmul.f32 %v231, %v229
  %v233 = vxor.u32 %v232, 2147483648
  %v234 = vsel %vm113, %v233, %v232
  %v235 = vsub.s32 4, %v211
  %v236 = vsel %vm113, %v235, %v211
  %v237 = vsel %vm112, %v109, %v234
  %v238 = vsel %vm112, 0, %v236
  %v239 = vmul.f32 %v237, %v237
  %v240 = vmul.f32 %v239, -0.001358992
  %v241 = vadd.f32 %v240, 0.041655596
  %v242 = vmul.f32 %v239, %v241
  %v243 = vadd.f32 %v242, -0.4999988
  %v244 = vmul.f32 %v239, %v243
  %v245 = vadd.f32 1.0, %v244
  %v246 = vmul.f32 %v237, %v237
  %v247 = vmul.f32 %v246, -0.00019511016
  %v248 = vadd.f32 %v247, 0.008332121
  %v249 = vmul.f32 %v246, %v248
  %v250 = vadd.f32 %v249, -0.16666654
  %v251 = vmul.f32 %v246, %v250
  %v252 = vadd.f32 %v251, 1.0
  %v253 = vmul.f32 %v252, %v237
  %vm254 = vweird.f32 %v109
  %v255 = vand.u32 %v238, 3
  %vm256 = vcmp.lt.s32.totalorder %v255, 2
  %vm257 = vcmp.eq.s32.totalorder %v255, 0
  %v258 = vxor.u32 %v253, 2147483648
  %v259 = vsel %vm257, %v245, %v258
  %vm260 = vcmp.eq.s32.totalorder %v255, 2
  %v261 = vxor.u32 %v245, 2147483648
  %v262 = vsel %vm260, %v261, %v253
  %v263 = vsel %vm256, %v259, %v262
  %v264 = vsel %vm254, nan, %v263
  %v265 = vand.u32 2147483647, %v110
  %vm266 = vcmp.le.f32.partialorder %v265, 0.7853982
  %vm267 = vcmp.lt.s32.totalorder %v110, 0
  %v268 = vand.u32 %v110, 2139095040
  %v269 = vshrl.u32 %v268, 23
  %v270 = vsub.s32 %v269, 127
  %v271 = vand.u32 2147483647, %v110
  %v272 = vand.u32 %v271, 8388607
  %v273 = vor.u32 %v272, 8388608
  %v274 = vsub.s32 0, %v273
  %v275 = vadd.s32 %v270, 1
  %vm276 = vcmp.gt.s32.totalorder %v275, 0
  %v277 = vsel %vm276, %v275, 0
  %v278 = vshrl.u32 %v277, 5
  %v279 = vand.u32 %v277, 31
  %v280 = vsub.s32 32, %v279
  %v281 = vshrl.u32 683565275, %v280
  %v282 = vshll.u32 683565275, %v279
  %v283 = vshrl.u32 2475754826, %v280
  %v284 = vor.u32 %v282, %v283
  %v285 = vshll.u32 2475754826, %v279
  %v286 = vshrl.u32 2131351028, %v280
  %v287 = vor.u32 %v285, %v286
  %v288 = vshll.u32 2131351028, %v279
  %v289 = vshrl.u32 2102212464, %v280
  %v290 = vor.u32 %v288, %v289
  %v291 = vshll.u32 2102212464, %v279
  %v292 = vshrl.u32 920167782, %v280
  %v293 = vor.u32 %v291, %v292
  %v294 = vshll.u32 920167782, %v279
  %v295 = vshrl.u32 1326507024, %v280
  %v296 = vor.u32 %v294, %v295
  %vm297 = vcmp.lt.s32.totalorder %v278, 1
  %vm298 = vcmp.lt.s32.totalorder %v278, 2
  %vm299 = vcmp.lt.s32.totalorder %v278, 3
  %vm300 = vcmp.lt.s32.totalorder %v278, 4
  %v301 = vsel %vm297, %v281, %v284
  %v302 = vsel %vm300, %v290, 2102212464
  %v303 = vsel %vm299, %v287, %v302
  %v304 = vsel %vm298, %v301, %v303
  %v305 = vsel %vm297, %v284, %v287
  %v306 = vsel %vm300, %v293, 920167782
  %v307 = vsel %vm299, %v290, %v306
  %v308 = vsel %vm298, %v305, %v307
  %v309 = vsel %vm297, %v287, %v290
  %v310 = vsel %vm300, %v296, 1326507024
  %v311 = vsel %vm299, %v293, %v310
  %v312 = vsel %vm298, %v309, %v311
  %v313 = vshll.u32 %v273, 8
  %v314 = vand.u32 %v313, 65535
  %v315 = vshrl.u32 %v313, 16
  %v316 = vand.u32 %v312, 65535
  %v317 = vshrl.u32 %v312, 16
  %v318 = vmul.u32 %v314, %v316
  %v319 = vmul.u32 %v314, %v317
  %v320 = vmul.u32 %v315, %v316
  %v321 = vmul.u32 %v315, %v317
  %v322 = vshll.u32 %v319, 16
  %v323 = vshrl.u32 %v319, 16
  %v324 = vshll.u32 %v320, 16
  %v325 = vshrl.u32 %v320, 16
  %vm326 = vc.u32 %v318, %v322
  %v327 = vsel %vm326, 1, 0
  %v328 = vadd.s32 %v318, %v322
  %v329 = vadd.s32 %v321, %v327
  %vm330 = vc.u32 %v328, %v324
  %v331 = vsel %vm330, 1, 0
  %v332 = vadd.s32 %v328, %v324
  %v333 = vadd.s32 %v329, %v331
  %v334 = vadd.s32 %v333, %v323
  %v335 = vadd.s32 %v334, %v325
  %v336 = vand.u32 %v313, 65535
  %v337 = vshrl.u32 %v313, 16
  %v338 = vand.u32 %v308, 65535
  %v339 = vshrl.u32 %v308, 16
  %v340 = vmul.u32 %v336, %v338
  %v341 = vmul.u32 %v336, %v339
  %v342 = vmul.u32 %v337, %v338
  %v343 = vmul.u32 %v337, %v339
  %v344 = vshll.u32 %v341, 16
  %v345 = vshrl.u32 %v341, 16
  %v346 = vshll.u32 %v342, 16
  %v347 = vshrl.u32 %v342, 16
  %vm348 = vc.u32 %v340, %v344
  %v349 = vsel %vm348, 1, 0
  %v350 = vadd.s32 %v340, %v344
  %v351 = vadd.s32 %v343, %v349
  %vm352 = vc.u32 %v350, %v346
  %v353 = vsel %vm352, 1, 0
  %v354 = vadd.s32 %v350, %v346
  %v355 = vadd.s32 %v351, %v353
  %v356 = vadd.s32 %v355, %v345
  %v357 = vadd.s32 %v356, %v347
  %v358 = vmul.u32 %v313, %v304
  %v359 = vadd.s32 %v335, %v354
  %vm360 = vc.u32 %v335, %v354
  %v361 = vadd.s32 %v357, 1
  %v362 = vsel %vm360, %v361, %v357
  %v363 = vadd.s32 %v358, %v362
  %v364 = vadd.s32 %v363, 536870912
  %v365 = vshrl.u32 %v364, 30
  %v366 = vshll.u32 %v365, 30
  %v367 = vsub.s32 %v363, %v366
  %vm368 = vcmp.lt.s32.totalorder %v367, 0
  %v369 = vsub.s32 0, %v367
  %v370 = vsel %vm368, %v369, %v367
  %v371 = vclz %v370
  %v372 = vsub.s32 %v371, 2
  %vm373 = vcmp.gt.s32.totalorder 0, %v372
  %v374 = vsel %vm373, 0, %v372
  %v375 = vsub.s32 32, %v374
  %v376 = vshll.u32 %v367, %v374
  %v377 = vshrl.u32 %v359, %v375
  %v378 = vor.u32 %v376, %v377
  %v379 = vsub.s32 4294967266, %v374
  %v380 = vadd.s32 %v379, 127
  %v381 = vshll.u32 %v380, 23
  %v382 = vor.u32 4788187, %v381
  %v383 = vand.u32 2147483647, %v382
  %v385 = vcvt.s32.f32 %v378
  %v386 = vmul.f32 %v385, %v383
  %v387 = vxor.u32 %v386, 2147483648
  %v388 = vsel %vm267, %v387, %v386
  %v389 = vsub.s32 4, %v365
  %v390 = vsel %vm267, %v389, %v365
  %v391 = vsel %vm266, %v110, %v388
  %v392 = vsel %vm266, 0, %v390
  %v393 = vmul.f32 %v391, %v391
  %v394 = vmul.f32 %v393, -0.001358992
  %v395 = vadd.f32 %v394, 0.041655596
  %v396 = vmul.f32 %v393, %v395
  %v397 = vadd.f32 %v396, -0.4999988
  %v398 = vmul.f32 %v393, %v397
  %v399 = vadd.f32 1.0, %v398
  %v400 = vmul.f32 %v391, %v391
  %v401 = vmul.f32 %v400, -0.00019511016
  %v402 = vadd.f32 %v401, 0.008332121
  %v403 = vmul.f32 %v400, %v402
  %v404 = vadd.f32 %v403, -0.16666654
  %v405 = vmul.f32 %v400, %v404
  %v406 = vadd.f32 %v405, 1.0
  %v407 = vmul.f32 %v406, %v391
  %vm408 = vweird.f32 %v110
  %v409 = vand.u32 %v392, 3
  %vm410 = vcmp.lt.s32.totalorder %v409, 2
  %vm411 = vcmp.eq.s32.totalorder %v409, 0
  %v412 = vxor.u32 %v407, 2147483648
  %v413 = vsel %vm411, %v399, %v412
  %vm414 = vcmp.eq.s32.totalorder %v409, 2
  %v415 = vxor.u32 %v399, 2147483648
  %v416 = vsel %vm414, %v415, %v407
  %v417 = vsel %vm410, %v413, %v416
  %v418 = vsel %vm408, nan, %v417
  %v419 = vmul.f32 %v96, %v264
  %v420 = vmul.f32 %v108, %v418
  %v421 = vld [vmem:[%s1] sm:$0xff]
  %v422 = vld [vmem:[%s1 + $0x8] sm:$0xff]
  %v423 = vmul.f32 %v419, 0.01
  %v424 = vmul.f32 %v420, 0.01
  %v425 = vadd.f32 %v421, %v423
  %v426 = vadd.f32 %v422, %v424
  %v427 = vadd.f32 %v425, 0.0
  %v428 = vadd.f32 %v426, 0.0
  %429 = vst [vmem:[%s2] sm:$0xff] %v427
  %430 = vst [vmem:[%s2 + $0x8] sm:$0xff] %v428
  // Predicated region
  $region6: #{gaussian_noise.1} parent=0 // pred_check
    _
  $region7: #{gaussian_noise.1} parent=0 // pred_check_branch
    %432 = sbr.rel (0) target = $region9
  $region8: #{gaussian_noise.1} parent=0 // pred_region
    _
  $region9: #{gaussian_noise.1} parent=0 // pred_fallthru
    _
  // Predicated region
  $region10: #{gaussian_noise.1} parent=0 // pred_check
    _
  $region11: #{gaussian_noise.1} parent=0 // pred_check_branch
    %434 = sbr.rel (0) target = $region13
  $region12: #{gaussian_noise.1} parent=0 // pred_region
    _
  $region13: #{gaussian_noise.1} parent=0 // pred_fallthru
    _

</llo_original>
